<compile_context>
chip_gen: v5e
topology: v5e:2x2
jax: 0.10.0
libtpu: 0.0.40
codegen_flags: <defaults>
</compile_context>

<pallas_src>
import jax
import jax.numpy as jnp
from jax.experimental import pallas as pl
from jax.experimental.pallas import tpu as pltpu


_LANES = 1024                    # lane-dense last dim (multiple of 128)
_MAX_TILE_ROWS = 512             # 512 x 1024 f32 = 2 MiB per block
_MIN_KERNEL_ELEMS = 8 * _LANES   # below one (8,1024) tile, fused XLA is strictly faster


def _normnet_kernel(params_ref, x_ref, o_ref):
    # params (SMEM): [0.5*w1, 0.5*b1, 0.5*w2, 0.5*w2 + b2]
    a = params_ref[0]
    c = params_ref[1]
    s = params_ref[2]
    d = params_ref[3]
    x = x_ref[...]
    # out = w2 * sigmoid(w1*x + b1) + b2, via a single tanh per element.
    o_ref[...] = s * jnp.tanh(a * x + c) + d


def _round_up(x: int, m: int) -> int:
    return -(-x // m) * m


def normnet_forward(images: jnp.ndarray, coef: float = 1.0, bias: float = 0.0) -> jnp.ndarray:
    """Pallas implementation of NormNet(coef, bias, 'sigmoid', [1, 1]).forward.

    images: (N, 1, H, W) float32, NCHW (PyTorch convention).
    """
    assert images.ndim == 4 and images.shape[1] == 1, "NormNet expects (N, 1, H, W)"
    images = images.astype(jnp.float32)
    N, C, H, W = images.shape
    total = N * C * H * W

    # Folded tanh-form constants, passed as runtime data (no per-(coef,bias) recompile).
    params = jnp.array(
        [0.5 * coef, 0.5 * bias, 0.5 * coef, 0.5 * coef + bias], dtype=jnp.float32
    )

    # Fallback: tiny inputs or sizes that would require a pad to become lane-dense.
    # A fused XLA elementwise avoids any extra HBM round trips there.
    if total % _LANES != 0 or total < _MIN_KERNEL_ELEMS:
        return params[2] * jnp.tanh(params[0] * images + params[1]) + params[3]

    rows = total // _LANES
    x2d = images.reshape(rows, _LANES)  # free reshape, no pad

    # Multiple of 8 sublanes, <= 2 MiB block, and <= ~rows/2 so the parallel grid
    # has at least 2 steps (v7x megacore) whenever the input spans > 1 minimal tile.
    tile_rows = min(_MAX_TILE_ROWS, max(8, _round_up(-(-rows // 2), 8)))
    grid = (pl.cdiv(rows, tile_rows),)  # ragged final block masked by Pallas

    out2d = pl.pallas_call(
        _normnet_kernel,
        out_shape=jax.ShapeDtypeStruct((rows, _LANES), jnp.float32),
        grid_spec=pl.GridSpec(
            grid=grid,
            in_specs=[
                pl.BlockSpec(memory_space=pltpu.MemorySpace.SMEM),    # params scalars
                pl.BlockSpec((tile_rows, _LANES), lambda i: (i, 0)),  # x slab
            ],
            out_specs=pl.BlockSpec((tile_rows, _LANES), lambda i: (i, 0)),
        ),
        compiler_params=pltpu.CompilerParams(
            dimension_semantics=("parallel",),
        ),
        cost_estimate=pl.CostEstimate(
            flops=4 * total,               # 2 mul + 2 add per element
            transcendentals=total,         # one tanh per element
            bytes_accessed=2 * 4 * total,  # exact streamed bytes (no padding)
        ),
    )(params, x2d)

    return out2d.reshape(N, C, H, W)  # free reshape, no slice


def _normnet_ref(images, coef=1.0, bias=0.0):
    # Pure-JAX reference matching PyTorch semantics of the default NormNet.
    y = images * coef + bias
    y = jax.nn.sigmoid(y)
    return y * coef + bias


if __name__ == "__main__":
    key = jax.random.PRNGKey(0)
    coef, bias = 0.75, 0.1

    # Single-channel images (Conv2d(1,1,...) implies C=1); large enough to take the
    # Pallas path with a 2-step parallel grid (32 lane-dense rows -> 2 tiles of 16).
    x = jax.random.normal(key, (2, 1, 128, 128), dtype=jnp.float32)
    out = jax.block_until_ready(normnet_forward(x, coef=coef, bias=bias))
    ref = _normnet_ref(x, coef=coef, bias=bias)
    assert out.shape == x.shape
    assert jnp.allclose(out, ref, atol=1e-5, rtol=1e-5)

    # Also exercise the small / non-lane-multiple fallback path.
    x_small = jax.random.normal(jax.random.PRNGKey(1), (2, 1, 16, 16), dtype=jnp.float32)
    out_small = jax.block_until_ready(normnet_forward(x_small, coef=coef, bias=bias))
    assert jnp.allclose(out_small, _normnet_ref(x_small, coef=coef, bias=bias),
                        atol=1e-5, rtol=1e-5)

    print("KERNEL_OK")
</pallas_src>

<mosaic_0001>
module attributes {stable_mosaic.version = 11 : i64} {
  func.func @_normnet_kernel(%arg0: i32, %arg1: memref<4xf32, #tpu.memory_space<smem>>, %arg2: memref<16x1024xf32, #tpu.memory_space<vmem>>, %arg3: memref<16x1024xf32, #tpu.memory_space<vmem>>) attributes {dimension_semantics = [#tpu.dimension_semantics<parallel>], iteration_bounds = array<i64: 2>, scalar_prefetch = 0 : i64, scratch_operands = 0 : i64, tpu.core_type = #tpu.core_type<tc>, window_params = [{transform_indices = @transform_0, window_bounds = array<i64: 4>}, {transform_indices = @transform_1, window_bounds = array<i64: 16, 1024>}, {transform_indices = @transform_2, window_bounds = array<i64: 16, 1024>}]} {
    %c0 = arith.constant 0 : index
    %0 = memref.load %arg1[%c0] : memref<4xf32, #tpu.memory_space<smem>>
    %c1 = arith.constant 1 : index
    %1 = memref.load %arg1[%c1] : memref<4xf32, #tpu.memory_space<smem>>
    %c2 = arith.constant 2 : index
    %2 = memref.load %arg1[%c2] : memref<4xf32, #tpu.memory_space<smem>>
    %c3 = arith.constant 3 : index
    %3 = memref.load %arg1[%c3] : memref<4xf32, #tpu.memory_space<smem>>
    %c0_0 = arith.constant 0 : index
    %c0_1 = arith.constant 0 : index
    %4 = vector.load %arg2[%c0_0, %c0_1] : memref<16x1024xf32, #tpu.memory_space<vmem>>, vector<16x1024xf32>
    %5 = vector.broadcast %0 : f32 to vector<16x1024xf32>
    %6 = arith.mulf %5, %4 : vector<16x1024xf32>
    %7 = vector.broadcast %1 : f32 to vector<16x1024xf32>
    %8 = arith.addf %6, %7 : vector<16x1024xf32>
    %9 = math.tanh %8 : vector<16x1024xf32>
    %10 = vector.broadcast %2 : f32 to vector<16x1024xf32>
    %11 = arith.mulf %10, %9 : vector<16x1024xf32>
    %12 = vector.broadcast %3 : f32 to vector<16x1024xf32>
    %13 = arith.addf %11, %12 : vector<16x1024xf32>
    %c0_2 = arith.constant 0 : index
    %c0_3 = arith.constant 0 : index
    %14 = vector.load %arg3[%c0_2, %c0_3] : memref<16x1024xf32, #tpu.memory_space<vmem>>, vector<16x1024xf32>
    tpu.vector_store %arg3[%c0_2, %c0_3], %13 {strides = array<i32>} : memref<16x1024xf32, #tpu.memory_space<vmem>>, vector<16x1024xf32>,
    return
  }
  func.func @transform_0(%arg0: i32) -> i32 {
    %c0_i32 = arith.constant 0 : i32
    %c0_i32_0 = arith.constant 0 : i32
    return %c0_i32 : i32
  }
  func.func @transform_1(%arg0: i32) -> (i32, i32) {
    %c0_i32 = arith.constant 0 : i32
    %c0_i32_0 = arith.constant 0 : i32
    return %arg0, %c0_i32 : i32, i32
  }
  func.func @transform_2(%arg0: i32) -> (i32, i32) {
    %c0_i32 = arith.constant 0 : i32
    %c0_i32_0 = arith.constant 0 : i32
    return %arg0, %c0_i32 : i32, i32
  }
}

</mosaic_0001>

<llo_original>
// kernel: tpu_custom_call.1
$region0: #{tpu_custom_call.1}
  #allocation0 [shape = 'u32[]', space=smem, size = 0x4, offset = 0x4, fixed_abs, tag = 'smem constant byte address 0x4 - core index']
  #allocation1 [shape = 'u32[72,128]{1,0:T(1,128)}', space=vmem, size = 0x9000, scoped, tag = 'internal scratch']
  %s0 = inlined_call_operand.hbm [shape: f32[4], index: 0, kind: input, shape index: {}]
  %s1 = inlined_call_operand.hbm [shape: f32[32,1024], index: 1, kind: input, shape index: {}]
  %s2 = inlined_call_operand.hbm [shape: f32[32,1024], index: 2, kind: output, shape index: {}]
  %s3 = sld [smem:[#allocation0]]
  $region49: #{tpu_custom_call.1} parent=0
    _
  %s5 = ssub.s32 1, %s3
  %s6 = scalar_select 0, %s5, %s3
  $region1: #{tpu_custom_call.1} parent=0
    #allocation2 [shape = 'u8[512]{0}', space=smem, size = 0x200, scoped, tag = 'input window, operand 0, single buffered']
    #allocation3 [shape = 's32[2]{0}', space=sflag, size = 0x8, scoped, tag = 'scoped memory for tpu_custom_call.1']
    #allocation4 [shape = 's32[2]{0}', space=sflag, size = 0x8, scoped, tag = 'scoped memory for tpu_custom_call.1']
    #allocation5 [shape = 's32[2]{0}', space=sflag, size = 0x8, scoped, tag = 'scoped memory for tpu_custom_call.1']
    #allocation6 [shape = 'u8[131072]{0}', space=vmem, size = 0x20000, scoped, tag = 'input window, operand 1']
    #allocation7 [shape = 'u8[131072]{0}', space=vmem, size = 0x20000, scoped, tag = 'output window, operand 0']
    %7 = vsyncpa [#allocation5], 0
    %8 = vsyncpa [#allocation3], 0
    %s9 = scalar_lea.sflag [#allocation3], 1
    %10 = vsyncpa %s9, 0
    %11 = vsyncpa [#allocation4], 0
    %s12 = scalar_lea.sflag [#allocation4], 1
    %13 = vsyncpa %s12, 0
    loop: start=0, step=1, limit=4
    $region2: #{tpu_custom_call.1} parent=1 // loop_pre_header
      _
    $region3: #{tpu_custom_call.1} parent=1 // loop_header
      %s15 = sphi 0, %s19
      %p16 = scmp.ge.s32.totalorder %s15, 4
      %s23 = sphi 0, %s23
      %s25 = sphi 0, %s23
      %s26 = sphi 0, %s25
      %s40 = sphi 0, %s26
      %s46 = sphi 0, %s48
      %s49 = sphi 0, %s46
      %s50 = sphi 0, %s49
      %s66 = sphi 0, %s50
      %s72 = sphi 0, %s74
      %s75 = sphi 0, %s72
      %s76 = sphi 0, %s75
      %s92 = sphi 0, %s76
    $region4: #{tpu_custom_call.1} parent=1 // loop_header_branch
      %18 = sbr.rel (%p16) target = $region8
    $region5: #{tpu_custom_call.1} parent=1 // loop_body
      %s20 = ssub.s32 %s15, 1
      %s21 = ssub.s32 %s15, 2
      %s22 = sadd.s32 %s15, 1
      %s24 = sadd.s32 %s23, 1
      %p27 = scmp.eq.s32.totalorder %s15, 1
      %p28 = scmp.ne.s32.totalorder %s23, %s25
      %p29 = scmp.eq.s32.totalorder %s15, 0
      %p30 = por %p28, %p29
      %p31 = scmp.ne.s32.totalorder %s23, %s25
      %p32 = scmp.eq.s32.totalorder %s20, 1
      %p33 = por %p31, %p32
      %p34 = scmp.ne.s32.totalorder %s25, %s26
      %p35 = scmp.eq.s32.totalorder %s20, 0
      %p36 = por %p34, %p35
      %p37 = scmp.ne.s32.totalorder %s25, %s26
      %p38 = scmp.eq.s32.totalorder %s21, 1
      %p39 = por %p37, %p38
      %p41 = scmp.ne.s32.totalorder %s26, %s40
      %p42 = scmp.eq.s32.totalorder %s21, 0
      %p43 = por %p41, %p42
      %s44 = ssub.s32 %s15, %s22
      %p45 = scmp.eq.s32.totalorder %s44, 0
      %s47 = sadd.s32 %s46, 1
      %s48 = scalar_select %p45, %s46, %s47
      %p51 = pneg %p45
      %p52 = scmp.eq.s32.totalorder %s15, 1
      %p53 = por %p51, %p52
      %p54 = scmp.ne.s32.totalorder %s46, %s49
      %p55 = scmp.eq.s32.totalorder %s15, 0
      %p56 = por %p54, %p55
      %p57 = scmp.ne.s32.totalorder %s46, %s49
      %p58 = scmp.eq.s32.totalorder %s20, 1
      %p59 = por %p57, %p58
      %p60 = scmp.ne.s32.totalorder %s49, %s50
      %p61 = scmp.eq.s32.totalorder %s20, 0
      %p62 = por %p60, %p61
      %p63 = scmp.ne.s32.totalorder %s49, %s50
      %p64 = scmp.eq.s32.totalorder %s21, 1
      %p65 = por %p63, %p64
      %p67 = scmp.ne.s32.totalorder %s50, %s66
      %p68 = scmp.eq.s32.totalorder %s21, 0
      %p69 = por %p67, %p68
      %s70 = ssub.s32 %s15, %s22
      %p71 = scmp.eq.s32.totalorder %s70, 0
      %s73 = sadd.s32 %s72, 1
      %s74 = scalar_select %p71, %s72, %s73
      %p77 = pneg %p71
      %p78 = scmp.eq.s32.totalorder %s15, 1
      %p79 = por %p77, %p78
      %p80 = scmp.ne.s32.totalorder %s72, %s75
      %p81 = scmp.eq.s32.totalorder %s15, 0
      %p82 = por %p80, %p81
      %p83 = scmp.ne.s32.totalorder %s72, %s75
      %p84 = scmp.eq.s32.totalorder %s20, 1
      %p85 = por %p83, %p84
      %p86 = scmp.ne.s32.totalorder %s75, %s76
      %p87 = scmp.eq.s32.totalorder %s20, 0
      %p88 = por %p86, %p87
      %p89 = scmp.ne.s32.totalorder %s75, %s76
      %p90 = scmp.eq.s32.totalorder %s21, 1
      %p91 = por %p89, %p90
      %p93 = scmp.ne.s32.totalorder %s76, %s92
      %p94 = scmp.eq.s32.totalorder %s21, 0
      %p95 = por %p93, %p94
      %p96 = scmp.le.s32.totalorder 1, %s15
      %p97 = scmp.lt.s32.totalorder %s15, 3
      %p98 = pnand %p96, %p97
      %p99 = pneg %p98
      // Predicated region
      $region9: #{tpu_custom_call.1} parent=5 // pred_check
        _
      $region10: #{tpu_custom_call.1} parent=5 // pred_check_branch
        %101 = sbr.rel (%p98) target = $region12
      $region11: #{tpu_custom_call.1} parent=5 // pred_region
        %s102 = ssub.s32 %s15, 1
        // Predicated region
        $region13: #{tpu_custom_call.1} parent=11 // pred_check
          %p103 = pneg %p36
        $region14: #{tpu_custom_call.1} parent=11 // pred_check_branch
          %105 = sbr.rel (%p103) target = $region16
        $region15: #{tpu_custom_call.1} parent=11 // pred_region
          %107 = vsyncadd [#allocation5], 0
          %s109 = sshll.u32 %s0, 4
          %s110 = int_to_ptr.hbm [resolvable:$true] %s109
          %112 = dma.hbm_to_smem %s110, 16, [#allocation2], [#allocation5]
        $region16: #{tpu_custom_call.1} parent=11 // pred_fallthru
          _
      $region12: #{tpu_custom_call.1} parent=5 // pred_fallthru
        _
      %p113 = scmp.lt.s32.totalorder %s15, 2
      // Predicated region
      $region17: #{tpu_custom_call.1} parent=5 // pred_check
        %p114 = pneg %p113
      $region18: #{tpu_custom_call.1} parent=5 // pred_check_branch
        %116 = sbr.rel (%p114) target = $region20
      $region19: #{tpu_custom_call.1} parent=5 // pred_region
        // Predicated region
        $region21: #{tpu_custom_call.1} parent=19 // pred_check
          %p117 = pneg %p56
        $region22: #{tpu_custom_call.1} parent=19 // pred_check_branch
          %119 = sbr.rel (%p117) target = $region24
        $region23: #{tpu_custom_call.1} parent=19 // pred_region
          %s120 = sand.u32 %s46, 1
          %s121 = scalar_lea.sflag [#allocation3], %s120
          %s122 = sand.u32 %s46, 1
          %s123 = smul.addr %s122, 128
          %s124 = scalar_lea.vmem [#allocation6], %s123
          %s125 = smul.u32 2, %s15
          %127 = vsyncadd %s121, 0
          %s128 = smul.addr %s125, 8
          %s129 = smul.addr %s128, 8
          %s130 = scalar_lea.hbm %s1, %s129
          %s131 = sshll.u32 %s130, 4
          %s132 = int_to_ptr.hbm [resolvable:$true] %s131
          %s133 = sshll.u32 %s124, 4
          %s134 = int_to_ptr.vmem [resolvable:$true] %s133
          %139 = dma.hbm_to_vmem [thread:$0]  %s132, 2048, %s134, %s121, 1024, 1024, 64
        $region24: #{tpu_custom_call.1} parent=19 // pred_fallthru
          _
      $region20: #{tpu_custom_call.1} parent=5 // pred_fallthru
        _
      %p140 = scmp.le.s32.totalorder 1, %s15
      %p141 = scmp.lt.s32.totalorder %s15, 3
      %p142 = pnand %p140, %p141
      %p143 = pneg %p142
      // Predicated region
      $region25: #{tpu_custom_call.1} parent=5 // pred_check
        _
      $region26: #{tpu_custom_call.1} parent=5 // pred_check_branch
        %145 = sbr.rel (%p142) target = $region28
      $region27: #{tpu_custom_call.1} parent=5 // pred_region
        %s146 = ssub.s32 %s15, 1
        // Predicated region
        $region29: #{tpu_custom_call.1} parent=27 // pred_check
          %p147 = pneg %p36
        $region30: #{tpu_custom_call.1} parent=27 // pred_check_branch
          %149 = sbr.rel (%p147) target = $region32
        $region31: #{tpu_custom_call.1} parent=27 // pred_region
          %151 = dma.done [#allocation5], 16
        $region32: #{tpu_custom_call.1} parent=27 // pred_fallthru
          _
        %s152 = sand.u32 %s49, 1
        %s153 = scalar_lea.sflag [#allocation3], %s152
        %s154 = sand.u32 %s49, 1
        %s155 = smul.addr %s154, 128
        %s156 = scalar_lea.vmem [#allocation6], %s155
        // Predicated region
        $region33: #{tpu_custom_call.1} parent=27 // pred_check
          %p157 = pneg %p62
        $region34: #{tpu_custom_call.1} parent=27 // pred_check_branch
          %159 = sbr.rel (%p157) target = $region36
        $region35: #{tpu_custom_call.1} parent=27 // pred_region
          %161 = dma.done %s153, 2048
        $region36: #{tpu_custom_call.1} parent=27 // pred_fallthru
          _
        %162 = sfence
        %p163 = pneg %p36
        %p164 = pneg %p33
        %s165 = sand.u32 %s49, 1
        %s166 = scalar_lea.sflag [#allocation3], %s165
        %s167 = sand.u32 %s49, 1
        %s168 = smul.addr %s167, 128
        %s169 = scalar_lea.vmem [#allocation6], %s168
        %p170 = pneg %p62
        %p171 = pneg %p59
        %p172 = pneg %p88
        %p173 = pneg %p85
        %s174 = sand.u32 %s75, 1
        %s175 = scalar_lea.sflag [#allocation4], %s174
        %s176 = sand.u32 %s75, 1
        %s177 = smul.addr %s176, 128
        %s178 = scalar_lea.vmem [#allocation7], %s177
        %s179 = smul.u32 2, %s20
        %s180 = smul.u32 2, %s20
        %s181 = sld [smem:[#allocation2]]
        %s182 = sld [smem:[#allocation2 + $0x1]]
        %s183 = sld [smem:[#allocation2 + $0x2]]
        %s184 = sld [smem:[#allocation2 + $0x3]]
        %v185 = vld [vmem:[%s156] sm:$0xff]
        %v186 = vld [vmem:[%s156 + $0x8] sm:$0xff]
        %v187 = vld [vmem:[%s156 + $0x10] sm:$0xff]
        %v188 = vld [vmem:[%s156 + $0x18] sm:$0xff]
        %v189 = vld [vmem:[%s156 + $0x20] sm:$0xff]
        %v190 = vld [vmem:[%s156 + $0x28] sm:$0xff]
        %v191 = vld [vmem:[%s156 + $0x30] sm:$0xff]
        %v192 = vld [vmem:[%s156 + $0x38] sm:$0xff]
        %v193 = vld [vmem:[%s156 + $0x40] sm:$0xff]
        %v194 = vld [vmem:[%s156 + $0x48] sm:$0xff]
        %v195 = vld [vmem:[%s156 + $0x50] sm:$0xff]
        %v196 = vld [vmem:[%s156 + $0x58] sm:$0xff]
        %v197 = vld [vmem:[%s156 + $0x60] sm:$0xff]
        %v198 = vld [vmem:[%s156 + $0x68] sm:$0xff]
        %v199 = vld [vmem:[%s156 + $0x70] sm:$0xff]
        %v200 = vld [vmem:[%s156 + $0x78] sm:$0xff]
        %v201 = vstv %s181
        %v202 = vmul.f32 %v201, %v185
        %v203 = vmul.f32 %v201, %v186
        %v204 = vmul.f32 %v201, %v187
        %v205 = vmul.f32 %v201, %v188
        %v206 = vmul.f32 %v201, %v189
        %v207 = vmul.f32 %v201, %v190
        %v208 = vmul.f32 %v201, %v191
        %v209 = vmul.f32 %v201, %v192
        %v210 = vmul.f32 %v201, %v193
        %v211 = vmul.f32 %v201, %v194
        %v212 = vmul.f32 %v201, %v195
        %v213 = vmul.f32 %v201, %v196
        %v214 = vmul.f32 %v201, %v197
        %v215 = vmul.f32 %v201, %v198
        %v216 = vmul.f32 %v201, %v199
        %v217 = vmul.f32 %v201, %v200
        %v218 = vstv %s182
        %v219 = vadd.f32 %v202, %v218
        %v220 = vadd.f32 %v203, %v218
        %v221 = vadd.f32 %v204, %v218
        %v222 = vadd.f32 %v205, %v218
        %v223 = vadd.f32 %v206, %v218
        %v224 = vadd.f32 %v207, %v218
        %v225 = vadd.f32 %v208, %v218
        %v226 = vadd.f32 %v209, %v218
        %v227 = vadd.f32 %v210, %v218
        %v228 = vadd.f32 %v211, %v218
        %v229 = vadd.f32 %v212, %v218
        %v230 = vadd.f32 %v213, %v218
        %v231 = vadd.f32 %v214, %v218
        %v232 = vadd.f32 %v215, %v218
        %v233 = vadd.f32 %v216, %v218
        %v234 = vadd.f32 %v217, %v218
        %v235 = vtanh.pop %v219
        %v236 = vtanh.pop %v220
        %v237 = vtanh.pop %v221
        %v238 = vtanh.pop %v222
        %v239 = vtanh.pop %v223
        %v240 = vtanh.pop %v224
        %v241 = vtanh.pop %v225
        %v242 = vtanh.pop %v226
        %v243 = vtanh.pop %v227
        %v244 = vtanh.pop %v228
        %v245 = vtanh.pop %v229
        %v246 = vtanh.pop %v230
        %v247 = vtanh.pop %v231
        %v248 = vtanh.pop %v232
        %v249 = vtanh.pop %v233
        %v250 = vtanh.pop %v234
        %v251 = vstv %s183
        %v252 = vmul.f32 %v251, %v235
        %v253 = vmul.f32 %v251, %v236
        %v254 = vmul.f32 %v251, %v237
        %v255 = vmul.f32 %v251, %v238
        %v256 = vmul.f32 %v251, %v239
        %v257 = vmul.f32 %v251, %v240
        %v258 = vmul.f32 %v251, %v241
        %v259 = vmul.f32 %v251, %v242
        %v260 = vmul.f32 %v251, %v243
        %v261 = vmul.f32 %v251, %v244
        %v262 = vmul.f32 %v251, %v245
        %v263 = vmul.f32 %v251, %v246
        %v264 = vmul.f32 %v251, %v247
        %v265 = vmul.f32 %v251, %v248
        %v266 = vmul.f32 %v251, %v249
        %v267 = vmul.f32 %v251, %v250
        %v268 = vstv %s184
        %v269 = vadd.f32 %v252, %v268
        %v270 = vadd.f32 %v253, %v268
        %v271 = vadd.f32 %v254, %v268
        %v272 = vadd.f32 %v255, %v268
        %v273 = vadd.f32 %v256, %v268
        %v274 = vadd.f32 %v257, %v268
        %v275 = vadd.f32 %v258, %v268
        %v276 = vadd.f32 %v259, %v268
        %v277 = vadd.f32 %v260, %v268
        %v278 = vadd.f32 %v261, %v268
        %v279 = vadd.f32 %v262, %v268
        %v280 = vadd.f32 %v263, %v268
        %v281 = vadd.f32 %v264, %v268
        %v282 = vadd.f32 %v265, %v268
        %v283 = vadd.f32 %v266, %v268
        %v284 = vadd.f32 %v267, %v268
        %285 = vst [vmem:[%s178] sm:$0xff] %v269
        %286 = vst [vmem:[%s178 + $0x8] sm:$0xff] %v270
        %287 = vst [vmem:[%s178 + $0x10] sm:$0xff] %v271
        %288 = vst [vmem:[%s178 + $0x18] sm:$0xff] %v272
        %289 = vst [vmem:[%s178 + $0x20] sm:$0xff] %v273
        %290 = vst [vmem:[%s178 + $0x28] sm:$0xff] %v274
        %291 = vst [vmem:[%s178 + $0x30] sm:$0xff] %v275
        %292 = vst [vmem:[%s178 + $0x38] sm:$0xff] %v276
        %293 = vst [vmem:[%s178 + $0x40] sm:$0xff] %v277
        %294 = vst [vmem:[%s178 + $0x48] sm:$0xff] %v278
        %295 = vst [vmem:[%s178 + $0x50] sm:$0xff] %v279
        %296 = vst [vmem:[%s178 + $0x58] sm:$0xff] %v280
        %297 = vst [vmem:[%s178 + $0x60] sm:$0xff] %v281
        %298 = vst [vmem:[%s178 + $0x68] sm:$0xff] %v282
        %299 = vst [vmem:[%s178 + $0x70] sm:$0xff] %v283
        %300 = vst [vmem:[%s178 + $0x78] sm:$0xff] %v284
        %s301 = sand.u32 %s75, 1
        %s302 = scalar_lea.sflag [#allocation4], %s301
        %s303 = sand.u32 %s75, 1
        %s304 = smul.addr %s303, 128
        %s305 = scalar_lea.vmem [#allocation7], %s304
        // Predicated region
        $region37: #{tpu_custom_call.1} parent=27 // pred_check
          %p306 = pneg %p85
        $region38: #{tpu_custom_call.1} parent=27 // pred_check_branch
          %308 = sbr.rel (%p306) target = $region40
        $region39: #{tpu_custom_call.1} parent=27 // pred_region
          %s309 = smul.u32 2, %s20
          %311 = vsyncadd %s302, 0
          %s312 = smul.addr %s309, 8
          %s313 = smul.addr %s312, 8
          %s314 = scalar_lea.hbm %s2, %s313
          %s315 = sshll.u32 %s305, 4
          %s316 = int_to_ptr.vmem [resolvable:$true] %s315
          %s317 = sshll.u32 %s314, 4
          %s318 = int_to_ptr.hbm [resolvable:$true] %s317
          %323 = dma.vmem_to_hbm [thread:$0]  %s316, 2048, %s318, %s302, 1024, 1024, 64
        $region40: #{tpu_custom_call.1} parent=27 // pred_fallthru
          _
      $region28: #{tpu_custom_call.1} parent=5 // pred_fallthru
        _
      %p324 = scmp.le.s32.totalorder 2, %s15
      // Predicated region
      $region41: #{tpu_custom_call.1} parent=5 // pred_check
        %p325 = pneg %p324
      $region42: #{tpu_custom_call.1} parent=5 // pred_check_branch
        %327 = sbr.rel (%p325) target = $region44
      $region43: #{tpu_custom_call.1} parent=5 // pred_region
        %s328 = ssub.s32 %s15, 2
        // Predicated region
        $region45: #{tpu_custom_call.1} parent=43 // pred_check
          %p329 = pneg %p91
        $region46: #{tpu_custom_call.1} parent=43 // pred_check_branch
          %331 = sbr.rel (%p329) target = $region48
        $region47: #{tpu_custom_call.1} parent=43 // pred_region
          %s332 = sand.u32 %s76, 1
          %s333 = scalar_lea.sflag [#allocation4], %s332
          %s334 = sand.u32 %s76, 1
          %s335 = smul.addr %s334, 128
          %s336 = scalar_lea.vmem [#allocation7], %s335
          %338 = dma.done %s333, 2048
        $region48: #{tpu_custom_call.1} parent=43 // pred_fallthru
          _
      $region44: #{tpu_custom_call.1} parent=5 // pred_fallthru
        _
    $region6: #{tpu_custom_call.1} parent=1 // loop_footer
      %s19 = sadd.s32 1, %s15
    $region7: #{tpu_custom_call.1} parent=1 // loop_footer_branch
      %14 = sbr.rel target = $region3
    $region8: #{tpu_custom_call.1} parent=1 // loop_exit
      _
    %339 = vsyncpa [#allocation3], 1
    %s340 = scalar_lea.sflag [#allocation3], 1
    %341 = vsyncpa %s340, 1
    %342 = vsyncpa [#allocation4], 1
    %s343 = scalar_lea.sflag [#allocation4], 1
    %344 = vsyncpa %s343, 1
    %345 = vsyncpa [#allocation5], 1
    %s346 = scalar_lea.sflag [#allocation5], 1
    %347 = vsyncpa %s346, 1

</llo_original>
